<compile_context>
chip_gen: v7x
topology: tpu7x:2x2x1
jax: 0.10.0
libtpu: 0.0.40
codegen_flags: <defaults>
</compile_context>

<pallas_src>
import functools
import math

import jax
import jax.numpy as jnp
from jax import lax
from jax.experimental import pallas as pl
from jax.experimental.pallas import tpu as pltpu


def _dsconv_kernel(x_ref, w_ref, b_ref, m_ref, o_ref, s_ref, *, taps, nbc):
    """One batch-block (Nb images) per grid step.

    x_ref : (Nb*C, HW)        flattened input images (n-major, channel-minor rows)
    w_ref : (Nb*O, KK*Nb*C)   fused depthwise+pointwise weights (block-diag over n)
    b_ref : (Nb*O, 1)         fused bias  b' = pw @ dw_bias + pw_bias (tiled over n)
    m_ref : (KK, HW)          per-tap zero-padding boundary masks (grid-invariant)
    o_ref : (Nb*O, HW)        flattened output images
    s_ref : (KK*Nb*C, HW) f32 scratch: stacked shifted+masked taps (MXU RHS)
    """
    x = x_ref[...].astype(jnp.float32)                       # (Nb*C, HW)

    # Depthwise receptive field: 9 static lane rotations (XLU) + boundary-mask
    # multiplies (VPU), written sublane-aligned into the stacked MXU operand.
    for k, (roll_shift, needs_mask) in enumerate(taps):
        rolled = x if roll_shift == 0 else pltpu.roll(x, shift=roll_shift, axis=1)
        if needs_mask:
            rolled = rolled * m_ref[pl.ds(k, 1), :]          # (1, HW) lane mask
        s_ref[pl.ds(k * nbc, nbc), :] = rolled

    # Fused depthwise + pointwise conv as a single MXU matmul (K = 9*Nb*C);
    # the result lands directly lane-dense in (Nb*O, HW).
    out = jnp.dot(w_ref[...], s_ref[...], preferred_element_type=jnp.float32)
    o_ref[...] = (out + b_ref[...]).astype(o_ref.dtype)


def _choose_batch_block(N, C, O, max_images_per_step=8):
    """Pick images-per-step Nb and grid length G."""
    # Sublane alignment: Nb*C and Nb*O must be multiples of 8 so the x/out
    # blocks satisfy the TPU (8, 128) tiling rule (and the taps stay
    # sublane-dense / the scratch stores stay aligned).
    align_c = 8 // math.gcd(C, 8)
    align_o = 8 // math.gcd(O, 8)
    align = align_c * align_o // math.gcd(align_c, align_o)
    # Batch enough per step to amortize the ~0.35 us per-step overhead, but aim
    # for >= 2 grid steps when N allows (v7x megacore); cap Nb so the
    # block-diagonal matmul waste stays negligible vs. step overhead.
    target = max(1, min(max_images_per_step, (N + 1) // 2))
    Nb = max(align, ((target + align - 1) // align) * align)
    G = (N + Nb - 1) // Nb
    return Nb, G


def dsconv2d_pallas(x_nchw, dw_weight, dw_bias, pw_weight, pw_bias, *, padding=1,
                    max_images_per_step=8):
    """Forward of DSConv2dOp: point_wise(depth_wise(x)) with the module defaults.

    x_nchw (N, C, H, W); PyTorch-convention weights: dw_weight (C*ch_mult,1,KH,KW)
    with ch_mult==1, dw_bias (C,), pw_weight (O, C, 1, 1), pw_bias (O,).
    Assumes stride=1, dilation=1, zero padding with padding == (ksize-1)//2.
    Returns (N, O, H, W)."""
    N, C, H, W = x_nchw.shape
    Cm, one, KH, KW = dw_weight.shape
    assert Cm == C and one == 1, "kernel assumes ch_mult == 1"
    assert H + 2 * padding - KH + 1 == H and W + 2 * padding - KW + 1 == W, \
        "kernel assumes stride=1 and 'same'-sized output (padding=(K-1)//2)"
    O = pw_weight.shape[0]
    HW = H * W
    KK = KH * KW
    assert HW % 128 == 0, "flattened spatial extent must be a multiple of 128 lanes"

    Nb, G = _choose_batch_block(N, C, O, max_images_per_step)
    N_pad = Nb * G

    f32 = jnp.float32
    # Fold depthwise taps + both biases into the 1x1 conv (single MXU matmul):
    #   W'[o, (k, c)] = pw[o, c] * dw[c, k],   b' = pw @ dw_bias + pw_bias
    # then block-diagonalize over the Nb images packed into one grid step.
    dwk = dw_weight[:, 0, :, :].reshape(C, KK).astype(f32)         # (C, KK)
    pw = pw_weight[:, :, 0, 0].astype(f32)                          # (O, C)
    fused = pw[:, :, None] * dwk[None, :, :]                        # (O, C, KK)
    w_big = jnp.einsum("ock,nm->nokmc", fused, jnp.eye(Nb, dtype=f32))
    w_big = w_big.reshape(Nb * O, KK * Nb * C)                      # (Nb*O, KK*Nb*C)
    b_big = jnp.tile(pw @ dw_bias.astype(f32) + pw_bias.astype(f32), Nb)
    b_big = b_big.reshape(Nb * O, 1)

    # Per-tap zero-padding boundary masks (grid-invariant input, DMA'd once)
    # and the static lane-roll amounts.
    rows = jnp.arange(HW, dtype=jnp.int32) // W
    cols = jnp.arange(HW, dtype=jnp.int32) % W
    masks, taps = [], []
    for kh in range(KH):
        for kw in range(KW):
            dh, dv = kh - padding, kw - padding
            s = dh * W + dv                                         # flat source offset
            taps.append(((-s) % HW, (dh != 0) or (dv != 0)))
            ok = (rows + dh >= 0) & (rows + dh < H) & (cols + dv >= 0) & (cols + dv < W)
            masks.append(ok.astype(f32))
    masks = jnp.stack(masks, axis=0)                                # (KK, HW)

    # Free reshape only: (N, C, H, W) -> (N*C, HW) keeps NCHW storage with H*W
    # on the lane axis and n-major/channel-minor rows on sublanes.
    x_flat = x_nchw.reshape(N * C, HW)
    if N_pad != N:
        x_flat = jnp.pad(x_flat, ((0, (N_pad - N) * C), (0, 0)))

    kernel = functools.partial(_dsconv_kernel, taps=tuple(taps), nbc=Nb * C)

    out_flat = pl.pallas_call(
        kernel,
        out_shape=jax.ShapeDtypeStruct((N_pad * O, HW), x_nchw.dtype),
        grid=(G,),
        in_specs=[
            pl.BlockSpec((Nb * C, HW), lambda g: (g, 0)),            # images
            pl.BlockSpec((Nb * O, KK * Nb * C), lambda g: (0, 0)),   # fused weights
            pl.BlockSpec((Nb * O, 1), lambda g: (0, 0)),             # fused bias
            pl.BlockSpec((KK, HW), lambda g: (0, 0)),                # tap masks
        ],
        out_specs=pl.BlockSpec((Nb * O, HW), lambda g: (g, 0)),
        scratch_shapes=[pltpu.VMEM((KK * Nb * C, HW), jnp.float32)],
        compiler_params=pltpu.CompilerParams(dimension_semantics=("parallel",)),
    )(x_flat, w_big, b_big, masks)

    out = out_flat.reshape(N_pad, O, H, W)
    return out[:N] if N_pad != N else out


def dsconv2d_reference(x_nchw, dw_weight, dw_bias, pw_weight, pw_bias, *, padding=1):
    """Pure-JAX reference matching PyTorch nn.Conv2d semantics (NCHW), f32-exact."""
    C = x_nchw.shape[1]
    prec = lax.Precision.HIGHEST
    y = lax.conv_general_dilated(
        x_nchw, dw_weight, window_strides=(1, 1),
        padding=((padding, padding), (padding, padding)),
        feature_group_count=C,
        dimension_numbers=("NCHW", "OIHW", "NCHW"), precision=prec)
    y = y + dw_bias[None, :, None, None]
    z = lax.conv_general_dilated(
        y, pw_weight, window_strides=(1, 1), padding="VALID",
        dimension_numbers=("NCHW", "OIHW", "NCHW"), precision=prec)
    return z + pw_bias[None, :, None, None]


if __name__ == "__main__":
    # Small deterministic shapes consistent with the module's forward.
    N, C, H, W = 2, 4, 16, 16
    O, KH, KW = 8, 3, 3
    PAD = 1

    key = jax.random.PRNGKey(0)
    k1, k2, k3, k4, k5 = jax.random.split(key, 5)
    x = jax.random.normal(k1, (N, C, H, W), jnp.float32)
    dw_weight = 0.1 * jax.random.normal(k2, (C, 1, KH, KW), jnp.float32)   # depth_wise.weight
    dw_bias = 0.1 * jax.random.normal(k3, (C,), jnp.float32)               # depth_wise.bias
    pw_weight = 0.1 * jax.random.normal(k4, (O, C, 1, 1), jnp.float32)     # point_wise.weight
    pw_bias = 0.1 * jax.random.normal(k5, (O,), jnp.float32)               # point_wise.bias

    out = dsconv2d_pallas(x, dw_weight, dw_bias, pw_weight, pw_bias, padding=PAD)
    out = jax.block_until_ready(out)

    ref = dsconv2d_reference(x, dw_weight, dw_bias, pw_weight, pw_bias, padding=PAD)
    assert out.shape == (N, O, H, W)
    assert jnp.allclose(out, ref, atol=1e-5, rtol=1e-5), "mismatch vs JAX conv reference"

    # TODO(synk): dropout / batchnorm / activation and the repeat branch are
    # Identity / disabled in the default config and therefore not emitted.
    print("KERNEL_OK")
</pallas_src>

<mosaic_0001>
module attributes {stable_mosaic.version = 11 : i64} {
  func.func @_dsconv_kernel(%arg0: i32, %arg1: memref<8x256xf32, #tpu.memory_space<vmem>>, %arg2: memref<16x72xf32, #tpu.memory_space<vmem>>, %arg3: memref<16x1xf32, #tpu.memory_space<vmem>>, %arg4: memref<9x256xf32, #tpu.memory_space<vmem>>, %arg5: memref<16x256xf32, #tpu.memory_space<vmem>>, %arg6: memref<72x256xf32, #tpu.memory_space<vmem>>) attributes {dimension_semantics = [#tpu.dimension_semantics<parallel>], iteration_bounds = array<i64: 1>, scalar_prefetch = 0 : i64, scratch_operands = 1 : i64, tpu.core_type = #tpu.core_type<tc>, window_params = [{transform_indices = @transform_0, window_bounds = array<i64: 8, 256>}, {pipeline_mode = #tpu.pipeline_mode<synchronous>, transform_indices = @transform_1, window_bounds = array<i64: 16, 72>}, {pipeline_mode = #tpu.pipeline_mode<synchronous>, transform_indices = @transform_2, window_bounds = array<i64: 16, 1>}, {pipeline_mode = #tpu.pipeline_mode<synchronous>, transform_indices = @transform_3, window_bounds = array<i64: 9, 256>}, {transform_indices = @transform_4, window_bounds = array<i64: 16, 256>}]} {
    %c0 = arith.constant 0 : index
    %c0_0 = arith.constant 0 : index
    %0 = vector.load %arg1[%c0, %c0_0] : memref<8x256xf32, #tpu.memory_space<vmem>>, vector<8x256xf32>
    %c17_i32 = arith.constant 17 : i32
    %1 = tpu.dynamic_rotate %0 by %c17_i32 dim 1 : vector<8x256xf32>, i32 -> vector<8x256xf32>
    %c0_1 = arith.constant 0 : index
    %c0_2 = arith.constant 0 : index
    %2 = vector.load %arg4[%c0_1, %c0_2] : memref<9x256xf32, #tpu.memory_space<vmem>>, vector<1x256xf32>
    %3 = vector.broadcast %2 : vector<1x256xf32> to vector<8x256xf32>
    %4 = arith.mulf %1, %3 : vector<8x256xf32>
    %c0_3 = arith.constant 0 : index
    %c0_4 = arith.constant 0 : index
    %5 = vector.load %arg6[%c0_3, %c0_4] : memref<72x256xf32, #tpu.memory_space<vmem>>, vector<8x256xf32>
    tpu.vector_store %arg6[%c0_3, %c0_4], %4 {strides = array<i32>} : memref<72x256xf32, #tpu.memory_space<vmem>>, vector<8x256xf32>,
    %c16_i32 = arith.constant 16 : i32
    %6 = tpu.dynamic_rotate %0 by %c16_i32 dim 1 : vector<8x256xf32>, i32 -> vector<8x256xf32>
    %c1 = arith.constant 1 : index
    %c0_5 = arith.constant 0 : index
    %7 = vector.load %arg4[%c1, %c0_5] : memref<9x256xf32, #tpu.memory_space<vmem>>, vector<1x256xf32>
    %8 = vector.broadcast %7 : vector<1x256xf32> to vector<8x256xf32>
    %9 = arith.mulf %6, %8 : vector<8x256xf32>
    %c8 = arith.constant 8 : index
    %c0_6 = arith.constant 0 : index
    %10 = vector.load %arg6[%c8, %c0_6] : memref<72x256xf32, #tpu.memory_space<vmem>>, vector<8x256xf32>
    tpu.vector_store %arg6[%c8, %c0_6], %9 {strides = array<i32>} : memref<72x256xf32, #tpu.memory_space<vmem>>, vector<8x256xf32>,
    %c15_i32 = arith.constant 15 : i32
    %11 = tpu.dynamic_rotate %0 by %c15_i32 dim 1 : vector<8x256xf32>, i32 -> vector<8x256xf32>
    %c2 = arith.constant 2 : index
    %c0_7 = arith.constant 0 : index
    %12 = vector.load %arg4[%c2, %c0_7] : memref<9x256xf32, #tpu.memory_space<vmem>>, vector<1x256xf32>
    %13 = vector.broadcast %12 : vector<1x256xf32> to vector<8x256xf32>
    %14 = arith.mulf %11, %13 : vector<8x256xf32>
    %c16 = arith.constant 16 : index
    %c0_8 = arith.constant 0 : index
    %15 = vector.load %arg6[%c16, %c0_8] : memref<72x256xf32, #tpu.memory_space<vmem>>, vector<8x256xf32>
    tpu.vector_store %arg6[%c16, %c0_8], %14 {strides = array<i32>} : memref<72x256xf32, #tpu.memory_space<vmem>>, vector<8x256xf32>,
    %c1_i32 = arith.constant 1 : i32
    %16 = tpu.dynamic_rotate %0 by %c1_i32 dim 1 : vector<8x256xf32>, i32 -> vector<8x256xf32>
    %c3 = arith.constant 3 : index
    %c0_9 = arith.constant 0 : index
    %17 = vector.load %arg4[%c3, %c0_9] : memref<9x256xf32, #tpu.memory_space<vmem>>, vector<1x256xf32>
    %18 = vector.broadcast %17 : vector<1x256xf32> to vector<8x256xf32>
    %19 = arith.mulf %16, %18 : vector<8x256xf32>
    %c24 = arith.constant 24 : index
    %c0_10 = arith.constant 0 : index
    %20 = vector.load %arg6[%c24, %c0_10] : memref<72x256xf32, #tpu.memory_space<vmem>>, vector<8x256xf32>
    tpu.vector_store %arg6[%c24, %c0_10], %19 {strides = array<i32>} : memref<72x256xf32, #tpu.memory_space<vmem>>, vector<8x256xf32>,
    %c32 = arith.constant 32 : index
    %c0_11 = arith.constant 0 : index
    %21 = vector.load %arg6[%c32, %c0_11] : memref<72x256xf32, #tpu.memory_space<vmem>>, vector<8x256xf32>
    tpu.vector_store %arg6[%c32, %c0_11], %0 {strides = array<i32>} : memref<72x256xf32, #tpu.memory_space<vmem>>, vector<8x256xf32>,
    %c255_i32 = arith.constant 255 : i32
    %22 = tpu.dynamic_rotate %0 by %c255_i32 dim 1 : vector<8x256xf32>, i32 -> vector<8x256xf32>
    %c5 = arith.constant 5 : index
    %c0_12 = arith.constant 0 : index
    %23 = vector.load %arg4[%c5, %c0_12] : memref<9x256xf32, #tpu.memory_space<vmem>>, vector<1x256xf32>
    %24 = vector.broadcast %23 : vector<1x256xf32> to vector<8x256xf32>
    %25 = arith.mulf %22, %24 : vector<8x256xf32>
    %c40 = arith.constant 40 : index
    %c0_13 = arith.constant 0 : index
    %26 = vector.load %arg6[%c40, %c0_13] : memref<72x256xf32, #tpu.memory_space<vmem>>, vector<8x256xf32>
    tpu.vector_store %arg6[%c40, %c0_13], %25 {strides = array<i32>} : memref<72x256xf32, #tpu.memory_space<vmem>>, vector<8x256xf32>,
    %c241_i32 = arith.constant 241 : i32
    %27 = tpu.dynamic_rotate %0 by %c241_i32 dim 1 : vector<8x256xf32>, i32 -> vector<8x256xf32>
    %c6 = arith.constant 6 : index
    %c0_14 = arith.constant 0 : index
    %28 = vector.load %arg4[%c6, %c0_14] : memref<9x256xf32, #tpu.memory_space<vmem>>, vector<1x256xf32>
    %29 = vector.broadcast %28 : vector<1x256xf32> to vector<8x256xf32>
    %30 = arith.mulf %27, %29 : vector<8x256xf32>
    %c48 = arith.constant 48 : index
    %c0_15 = arith.constant 0 : index
    %31 = vector.load %arg6[%c48, %c0_15] : memref<72x256xf32, #tpu.memory_space<vmem>>, vector<8x256xf32>
    tpu.vector_store %arg6[%c48, %c0_15], %30 {strides = array<i32>} : memref<72x256xf32, #tpu.memory_space<vmem>>, vector<8x256xf32>,
    %c240_i32 = arith.constant 240 : i32
    %32 = tpu.dynamic_rotate %0 by %c240_i32 dim 1 : vector<8x256xf32>, i32 -> vector<8x256xf32>
    %c7 = arith.constant 7 : index
    %c0_16 = arith.constant 0 : index
    %33 = vector.load %arg4[%c7, %c0_16] : memref<9x256xf32, #tpu.memory_space<vmem>>, vector<1x256xf32>
    %34 = vector.broadcast %33 : vector<1x256xf32> to vector<8x256xf32>
    %35 = arith.mulf %32, %34 : vector<8x256xf32>
    %c56 = arith.constant 56 : index
    %c0_17 = arith.constant 0 : index
    %36 = vector.load %arg6[%c56, %c0_17] : memref<72x256xf32, #tpu.memory_space<vmem>>, vector<8x256xf32>
    tpu.vector_store %arg6[%c56, %c0_17], %35 {strides = array<i32>} : memref<72x256xf32, #tpu.memory_space<vmem>>, vector<8x256xf32>,
    %c239_i32 = arith.constant 239 : i32
    %37 = tpu.dynamic_rotate %0 by %c239_i32 dim 1 : vector<8x256xf32>, i32 -> vector<8x256xf32>
    %c8_18 = arith.constant 8 : index
    %c0_19 = arith.constant 0 : index
    %38 = vector.load %arg4[%c8_18, %c0_19] : memref<9x256xf32, #tpu.memory_space<vmem>>, vector<1x256xf32>
    %39 = vector.broadcast %38 : vector<1x256xf32> to vector<8x256xf32>
    %40 = arith.mulf %37, %39 : vector<8x256xf32>
    %c64 = arith.constant 64 : index
    %c0_20 = arith.constant 0 : index
    %41 = vector.load %arg6[%c64, %c0_20] : memref<72x256xf32, #tpu.memory_space<vmem>>, vector<8x256xf32>
    tpu.vector_store %arg6[%c64, %c0_20], %40 {strides = array<i32>} : memref<72x256xf32, #tpu.memory_space<vmem>>, vector<8x256xf32>,
    %c0_21 = arith.constant 0 : index
    %c0_22 = arith.constant 0 : index
    %42 = vector.load %arg2[%c0_21, %c0_22] : memref<16x72xf32, #tpu.memory_space<vmem>>, vector<16x72xf32>
    %c0_23 = arith.constant 0 : index
    %c0_24 = arith.constant 0 : index
    %43 = vector.load %arg6[%c0_23, %c0_24] : memref<72x256xf32, #tpu.memory_space<vmem>>, vector<72x256xf32>
    %cst = arith.constant dense<0.000000e+00> : vector<16x256xf32>
    %44 = tpu.matmul %42, %43, %cst {dimension_numbers = #tpu.dot_dimension_numbers<[1], [0], [0], [1], [0, 0, 1, 1], [], []>} : vector<16x72xf32>, vector<72x256xf32>, vector<16x256xf32> -> vector<16x256xf32>
    %c0_25 = arith.constant 0 : index
    %c0_26 = arith.constant 0 : index
    %45 = vector.load %arg3[%c0_25, %c0_26] : memref<16x1xf32, #tpu.memory_space<vmem>>, vector<16x1xf32>
    %46 = vector.broadcast %45 : vector<16x1xf32> to vector<16x256xf32>
    %47 = arith.addf %44, %46 : vector<16x256xf32>
    %c0_27 = arith.constant 0 : index
    %c0_28 = arith.constant 0 : index
    %48 = vector.load %arg5[%c0_27, %c0_28] : memref<16x256xf32, #tpu.memory_space<vmem>>, vector<16x256xf32>
    tpu.vector_store %arg5[%c0_27, %c0_28], %47 {strides = array<i32>} : memref<16x256xf32, #tpu.memory_space<vmem>>, vector<16x256xf32>,
    return
  }
  func.func @transform_0(%arg0: i32) -> (i32, i32) {
    %c0_i32 = arith.constant 0 : i32
    %c0_i32_0 = arith.constant 0 : i32
    return %arg0, %c0_i32 : i32, i32
  }
  func.func @transform_1(%arg0: i32) -> (i32, i32) {
    %c0_i32 = arith.constant 0 : i32
    %c0_i32_0 = arith.constant 0 : i32
    %c0_i32_1 = arith.constant 0 : i32
    return %c0_i32, %c0_i32_0 : i32, i32
  }
  func.func @transform_2(%arg0: i32) -> (i32, i32) {
    %c0_i32 = arith.constant 0 : i32
    %c0_i32_0 = arith.constant 0 : i32
    %c0_i32_1 = arith.constant 0 : i32
    return %c0_i32, %c0_i32_0 : i32, i32
  }
  func.func @transform_3(%arg0: i32) -> (i32, i32) {
    %c0_i32 = arith.constant 0 : i32
    %c0_i32_0 = arith.constant 0 : i32
    %c0_i32_1 = arith.constant 0 : i32
    return %c0_i32, %c0_i32_0 : i32, i32
  }
  func.func @transform_4(%arg0: i32) -> (i32, i32) {
    %c0_i32 = arith.constant 0 : i32
    %c0_i32_0 = arith.constant 0 : i32
    return %arg0, %c0_i32 : i32, i32
  }
}

</mosaic_0001>

<llo_original>
// kernel: tpu_custom_call.1
$region0: #{tpu_custom_call.1}
  #allocation0 [shape = 'u32[]', space=smem, size = 0x4, offset = 0x4, fixed_abs, tag = 'smem constant byte address 0x4 - core index']
  #allocation1 [shape = 'u32[144,128]{1,0:T(1,128)}', space=vmem, size = 0x12000, scoped, tag = 'internal scratch']
  #allocation2 [shape = 'f32[72,256]{1,0:T(8,128)}', space=vmem, size = 0x12000, scoped, tag = 'scratch operand']
  %s0 = inlined_call_operand.vmem [shape: f32[8,256], index: 0, kind: input, shape index: {}]
  %s1 = inlined_call_operand.hbm [shape: f32[16,72], index: 1, kind: input, shape index: {}]
  %s2 = inlined_call_operand.vmem [shape: f32[16,1], index: 2, kind: input, shape index: {}]
  %s3 = inlined_call_operand.hbm [shape: f32[9,256], index: 3, kind: input, shape index: {}]
  %s4 = inlined_call_operand.hbm [shape: f32[16,256], index: 4, kind: output, shape index: {}]
  %s5 = sld [smem:[#allocation0]]
  $region34: #{tpu_custom_call.1} parent=0
    _
  %s7 = ssub.s32 1, %s5
  %s8 = scalar_select 0, %s7, %s5
  $region1: #{tpu_custom_call.1} parent=0
    #allocation3 [shape = 'u8[8192]{0}', space=vmem, size = 0x2000, scoped, tag = 'input window, operand 1, single buffered']
    #allocation4 [shape = 's32[1]{0}', space=sflag, size = 0x4, scoped, tag = 'scoped memory for tpu_custom_call.1']
    #allocation5 [shape = 's32[1]{0}', space=sflag, size = 0x4, scoped, tag = 'scoped memory for tpu_custom_call.1']
    #allocation6 [shape = 'u8[16384]{0}', space=vmem, size = 0x4000, scoped, tag = 'input window, operand 3, single buffered']
    #allocation7 [shape = 's32[1]{0}', space=sflag, size = 0x4, scoped, tag = 'scoped memory for tpu_custom_call.1']
    #allocation8 [shape = 'u8[16384]{0}', space=vmem, size = 0x4000, scoped, tag = 'output window, operand 0, single buffered']
    %9 = vsyncpa [#allocation4], 0
    %10 = vsyncpa [#allocation7], 0
    %11 = vsyncpa [#allocation5], 0
    // Predicated region
    $region2: #{tpu_custom_call.1} parent=1 // pred_check
      _
    $region3: #{tpu_custom_call.1} parent=1 // pred_check_branch
      %13 = sbr.rel (0) target = $region5
    $region4: #{tpu_custom_call.1} parent=1 // pred_region
      _
    $region5: #{tpu_custom_call.1} parent=1 // pred_fallthru
      _
    // Predicated region
    $region6: #{tpu_custom_call.1} parent=1 // pred_check
      _
    $region7: #{tpu_custom_call.1} parent=1 // pred_check_branch
      %15 = sbr.rel (0) target = $region9
    $region8: #{tpu_custom_call.1} parent=1 // pred_region
      %s17 = ssub.s32 256, 256
      %18 = vsyncadd [#allocation4], %s17
      %s19 = sshll.u32 [#allocation3], 4
      %s20 = int_to_ptr.vmem [resolvable:$true] %s19
      %25 = dma.hbm_to_vmem [thread:$0]  %s1, 256, %s20, [#allocation4], 128, 128, 8
    $region9: #{tpu_custom_call.1} parent=1 // pred_fallthru
      _
    // Predicated region
    $region10: #{tpu_custom_call.1} parent=1 // pred_check
      _
    $region11: #{tpu_custom_call.1} parent=1 // pred_check_branch
      %27 = sbr.rel (0) target = $region13
    $region12: #{tpu_custom_call.1} parent=1 // pred_region
      _
    $region13: #{tpu_custom_call.1} parent=1 // pred_fallthru
      _
    // Predicated region
    $region14: #{tpu_custom_call.1} parent=1 // pred_check
      _
    $region15: #{tpu_custom_call.1} parent=1 // pred_check_branch
      %29 = sbr.rel (0) target = $region17
    $region16: #{tpu_custom_call.1} parent=1 // pred_region
      %s31 = ssub.s32 512, 512
      %32 = vsyncadd [#allocation7], %s31
      %s33 = sshll.u32 [#allocation6], 4
      %s34 = int_to_ptr.vmem [resolvable:$true] %s33
      %39 = dma.hbm_to_vmem [thread:$0]  %s3, 512, %s34, [#allocation7], 256, 256, 16
    $region17: #{tpu_custom_call.1} parent=1 // pred_fallthru
      _
    // Predicated region
    $region18: #{tpu_custom_call.1} parent=1 // pred_check
      _
    $region19: #{tpu_custom_call.1} parent=1 // pred_check_branch
      %41 = sbr.rel (0) target = $region21
    $region20: #{tpu_custom_call.1} parent=1 // pred_region
      %42 = dma.done [#allocation4], 256
    $region21: #{tpu_custom_call.1} parent=1 // pred_fallthru
      _
    // Predicated region
    $region22: #{tpu_custom_call.1} parent=1 // pred_check
      _
    $region23: #{tpu_custom_call.1} parent=1 // pred_check_branch
      %44 = sbr.rel (0) target = $region25
    $region24: #{tpu_custom_call.1} parent=1 // pred_region
      %45 = dma.done [#allocation7], 512
    $region25: #{tpu_custom_call.1} parent=1 // pred_fallthru
      _
    %v46 = vld [vmem:[%s0] sm:$0xff]
    %v47 = vld [vmem:[%s0 + $0x8] sm:$0xff]
    %48 = vrot.lane.b32.xlu0 %v46, 17
    %v49 = vpop.permute.xlu0 %48
    %50 = vrot.lane.b32.xlu0 %v47, 17
    %v51 = vpop.permute.xlu0 %50
    %v52 = vlaneseq
    %v53 = vand.u32 %v52, 127
    %vm54 = vcmp.lt.s32.totalorder %v53, 17
    %v55 = vsel %vm54, %v49, %v51
    %v56 = vsel %vm54, %v51, %v49
    %v57 = vld [vmem:[#allocation6] ss:$8 sm:$0x3]
    %v59 = vlaneseq
    %v60 = vshrl.u32 %v59, 7
    %v61 = vsub.s32 0, %v60
    %v62 = vrot.slane %v57, %v61
    %v63 = vlaneseq
    %v64 = vshrl.u32 %v63, 7
    %v65 = vsub.s32 1, %v64
    %v66 = vrot.slane %v57, %v65
    %v69 = vmul.f32 %v56, %v62
    %v70 = vmul.f32 %v55, %v66
    %71 = vst [vmem:[#allocation2] sm:$0xff] %v69
    %72 = vst [vmem:[#allocation2 + $0x8] sm:$0xff] %v70
    %73 = vrot.lane.b32.xlu0 %v46, 16
    %v74 = vpop.permute.xlu0 %73
    %75 = vrot.lane.b32.xlu0 %v47, 16
    %v76 = vpop.permute.xlu0 %75
    %vm77 = vcmp.lt.s32.totalorder %v53, 16
    %v78 = vsel %vm77, %v74, %v76
    %v79 = vsel %vm77, %v76, %v74
    %s80 = scalar_lea.vmem [#allocation6], 1
    %v81 = vld [vmem:[%s80] ss:$8 sm:$0x3]
    %v83 = vlaneseq
    %v84 = vshrl.u32 %v83, 7
    %v85 = vsub.s32 0, %v84
    %v86 = vrot.slane %v81, %v85
    %v87 = vlaneseq
    %v88 = vshrl.u32 %v87, 7
    %v89 = vsub.s32 1, %v88
    %v90 = vrot.slane %v81, %v89
    %v93 = vmul.f32 %v79, %v86
    %v94 = vmul.f32 %v78, %v90
    %95 = vst [vmem:[#allocation2 + $0x10] sm:$0xff] %v93
    %96 = vst [vmem:[#allocation2 + $0x18] sm:$0xff] %v94
    %97 = vrot.lane.b32.xlu0 %v46, 15
    %v98 = vpop.permute.xlu0 %97
    %99 = vrot.lane.b32.xlu0 %v47, 15
    %v100 = vpop.permute.xlu0 %99
    %vm101 = vcmp.lt.s32.totalorder %v53, 15
    %v102 = vsel %vm101, %v98, %v100
    %v103 = vsel %vm101, %v100, %v98
    %s104 = scalar_lea.vmem [#allocation6], 2
    %v105 = vld [vmem:[%s104] ss:$8 sm:$0x3]
    %v107 = vlaneseq
    %v108 = vshrl.u32 %v107, 7
    %v109 = vsub.s32 0, %v108
    %v110 = vrot.slane %v105, %v109
    %v111 = vlaneseq
    %v112 = vshrl.u32 %v111, 7
    %v113 = vsub.s32 1, %v112
    %v114 = vrot.slane %v105, %v113
    %v117 = vmul.f32 %v103, %v110
    %v118 = vmul.f32 %v102, %v114
    %119 = vst [vmem:[#allocation2 + $0x20] sm:$0xff] %v117
    %120 = vst [vmem:[#allocation2 + $0x28] sm:$0xff] %v118
    %121 = vrot.lane.b32.xlu0 %v46, 1
    %v122 = vpop.permute.xlu0 %121
    %123 = vrot.lane.b32.xlu0 %v47, 1
    %v124 = vpop.permute.xlu0 %123
    %vm125 = vcmp.lt.s32.totalorder %v53, 1
    %v126 = vsel %vm125, %v122, %v124
    %v127 = vsel %vm125, %v124, %v122
    %s128 = scalar_lea.vmem [#allocation6], 3
    %v129 = vld [vmem:[%s128] ss:$8 sm:$0x3]
    %v131 = vlaneseq
    %v132 = vshrl.u32 %v131, 7
    %v133 = vsub.s32 0, %v132
    %v134 = vrot.slane %v129, %v133
    %v135 = vlaneseq
    %v136 = vshrl.u32 %v135, 7
    %v137 = vsub.s32 1, %v136
    %v138 = vrot.slane %v129, %v137
    %v141 = vmul.f32 %v127, %v134
    %v142 = vmul.f32 %v126, %v138
    %143 = vst [vmem:[#allocation2 + $0x30] sm:$0xff] %v141
    %144 = vst [vmem:[#allocation2 + $0x38] sm:$0xff] %v142
    %145 = vst [vmem:[#allocation2 + $0x40] sm:$0xff] %v46
    %146 = vst [vmem:[#allocation2 + $0x48] sm:$0xff] %v47
    %147 = vrot.lane.b32.xlu0 %v46, 127
    %v148 = vpop.permute.xlu0 %147
    %149 = vrot.lane.b32.xlu0 %v47, 127
    %v150 = vpop.permute.xlu0 %149
    %vm151 = vcmp.lt.s32.totalorder %v53, 127
    %v152 = vsel %vm151, %v148, %v150
    %v153 = vsel %vm151, %v150, %v148
    %s154 = scalar_lea.vmem [#allocation6], 5
    %v155 = vld [vmem:[%s154] ss:$8 sm:$0x3]
    %v157 = vlaneseq
    %v158 = vshrl.u32 %v157, 7
    %v159 = vsub.s32 0, %v158
    %v160 = vrot.slane %v155, %v159
    %v161 = vlaneseq
    %v162 = vshrl.u32 %v161, 7
    %v163 = vsub.s32 1, %v162
    %v164 = vrot.slane %v155, %v163
    %v167 = vmul.f32 %v152, %v160
    %v168 = vmul.f32 %v153, %v164
    %169 = vst [vmem:[#allocation2 + $0x50] sm:$0xff] %v167
    %170 = vst [vmem:[#allocation2 + $0x58] sm:$0xff] %v168
    %171 = vrot.lane.b32.xlu0 %v46, 113
    %v172 = vpop.permute.xlu0 %171
    %173 = vrot.lane.b32.xlu0 %v47, 113
    %v174 = vpop.permute.xlu0 %173
    %vm175 = vcmp.lt.s32.totalorder %v53, 113
    %v176 = vsel %vm175, %v172, %v174
    %v177 = vsel %vm175, %v174, %v172
    %s178 = scalar_lea.vmem [#allocation6], 6
    %v179 = vld [vmem:[%s178] ss:$8 sm:$0x3]
    %v181 = vlaneseq
    %v182 = vshrl.u32 %v181, 7
    %v183 = vsub.s32 0, %v182
    %v184 = vrot.slane %v179, %v183
    %v185 = vlaneseq
    %v186 = vshrl.u32 %v185, 7
    %v187 = vsub.s32 1, %v186
    %v188 = vrot.slane %v179, %v187
    %v191 = vmul.f32 %v176, %v184
    %v192 = vmul.f32 %v177, %v188
    %193 = vst [vmem:[#allocation2 + $0x60] sm:$0xff] %v191
    %194 = vst [vmem:[#allocation2 + $0x68] sm:$0xff] %v192
    %195 = vrot.lane.b32.xlu0 %v46, 112
    %v196 = vpop.permute.xlu0 %195
    %197 = vrot.lane.b32.xlu0 %v47, 112
    %v198 = vpop.permute.xlu0 %197
    %vm199 = vcmp.lt.s32.totalorder %v53, 112
    %v200 = vsel %vm199, %v196, %v198
    %v201 = vsel %vm199, %v198, %v196
    %s202 = scalar_lea.vmem [#allocation6], 7
    %v203 = vld [vmem:[%s202] ss:$8 sm:$0x3]
    %v205 = vlaneseq
    %v206 = vshrl.u32 %v205, 7
    %v207 = vsub.s32 0, %v206
    %v208 = vrot.slane %v203, %v207
    %v209 = vlaneseq
    %v210 = vshrl.u32 %v209, 7
    %v211 = vsub.s32 1, %v210
    %v212 = vrot.slane %v203, %v211
    %v215 = vmul.f32 %v200, %v208
    %v216 = vmul.f32 %v201, %v212
    %217 = vst [vmem:[#allocation2 + $0x70] sm:$0xff] %v215
    %218 = vst [vmem:[#allocation2 + $0x78] sm:$0xff] %v216
    %219 = vrot.lane.b32.xlu0 %v46, 111
    %v220 = vpop.permute.xlu0 %219
    %221 = vrot.lane.b32.xlu0 %v47, 111
    %v222 = vpop.permute.xlu0 %221
    %vm223 = vcmp.lt.s32.totalorder %v53, 111
    %v224 = vsel %vm223, %v220, %v222
    %v225 = vsel %vm223, %v222, %v220
    %s226 = scalar_lea.vmem [#allocation6], 16
    %v227 = vld [vmem:[%s226] ss:$8 sm:$0x3]
    %v229 = vlaneseq
    %v230 = vshrl.u32 %v229, 7
    %v231 = vsub.s32 0, %v230
    %v232 = vrot.slane %v227, %v231
    %v233 = vlaneseq
    %v234 = vshrl.u32 %v233, 7
    %v235 = vsub.s32 1, %v234
    %v236 = vrot.slane %v227, %v235
    %v239 = vmul.f32 %v224, %v232
    %v240 = vmul.f32 %v225, %v236
    %241 = vst [vmem:[#allocation2 + $0x80] sm:$0xff] %v239
    %242 = vst [vmem:[#allocation2 + $0x88] sm:$0xff] %v240
    %v243 = vld [vmem:[#allocation3] sm:$0xff]
    %v244 = vld [vmem:[#allocation3 + $0x8] sm:$0xff]
    %v245 = vld [vmem:[#allocation2] sm:$0xff]
    %v246 = vld [vmem:[#allocation2 + $0x8] sm:$0xff]
    %v247 = vld [vmem:[#allocation2 + $0x10] sm:$0xff]
    %v248 = vld [vmem:[#allocation2 + $0x18] sm:$0xff]
    %v249 = vld [vmem:[#allocation2 + $0x20] sm:$0xff]
    %v250 = vld [vmem:[#allocation2 + $0x28] sm:$0xff]
    %v251 = vld [vmem:[#allocation2 + $0x30] sm:$0xff]
    %v252 = vld [vmem:[#allocation2 + $0x38] sm:$0xff]
    %v253 = vld [vmem:[#allocation2 + $0x40] sm:$0xff]
    %v254 = vld [vmem:[#allocation2 + $0x48] sm:$0xff]
    %v255 = vld [vmem:[#allocation2 + $0x50] sm:$0xff]
    %v256 = vld [vmem:[#allocation2 + $0x58] sm:$0xff]
    %v257 = vld [vmem:[#allocation2 + $0x60] sm:$0xff]
    %v258 = vld [vmem:[#allocation2 + $0x68] sm:$0xff]
    %v259 = vld [vmem:[#allocation2 + $0x70] sm:$0xff]
    %v260 = vld [vmem:[#allocation2 + $0x78] sm:$0xff]
    %v261 = vld [vmem:[#allocation2 + $0x80] sm:$0xff]
    %v262 = vld [vmem:[#allocation2 + $0x88] sm:$0xff]
    %v263 = vld [vmem:[%s2] sm:$0xff]
    %v264 = vld [vmem:[%s2 + $0x8] sm:$0xff]
    %266 = vset.pattern.permute.xlu0 0
    %267 = vperm.xlu0 %266, %v263
    %v268 = vpop.permute.xlu0 %267
    %271 = vset.pattern.permute.xlu0 0
    %272 = vperm.xlu0 %271, %v264
    %v273 = vpop.permute.xlu0 %272
    %vm275 = vcmask 588800
    %v277 = vsel %vm275, %v243, 0
    %v280 = vsel %vm275, %v244, 0
    %282 = vmatprep.subr.mxu0 %v246
    %283 = vmatpush1.msra.mxu0 %v245
    %284 = vmatprep.subr.mxu0 %v248
    %285 = vmatpush1.msra.mxu0 %v247
    %286 = vmatprep.subr.mxu0 %v250
    %287 = vmatpush1.msra.mxu0 %v249
    %288 = vmatprep.subr.mxu0 %v252
    %289 = vmatpush1.msra.mxu0 %v251
    %290 = vmatprep.subr.mxu0 %v254
    %291 = vmatpush1.msra.mxu0 %v253
    %292 = vmatprep.subr.mxu0 %v256
    %293 = vmatpush1.msra.mxu0 %v255
    %294 = vmatprep.subr.mxu0 %v258
    %295 = vmatpush1.msra.mxu0 %v257
    %296 = vmatprep.subr.mxu0 %v260
    %297 = vmatpush1.msra.mxu0 %v259
    %298 = vmatprep.subr.mxu0 %v262
    %299 = vmatpush1.msra.mxu0 %v261
    %300 = vmatprep.subr.mxu0 0.0
    %301 = vmatpush1.msra.mxu0 0.0
    %302 = vmatprep.subr.mxu0 0.0
    %303 = vmatpush1.msra.mxu0 0.0
    %304 = vmatprep.subr.mxu0 0.0
    %305 = vmatpush1.msra.mxu0 0.0
    %306 = vmatprep.subr.mxu0 0.0
    %307 = vmatpush1.msra.mxu0 0.0
    %308 = vmatprep.subr.mxu0 0.0
    %309 = vmatpush1.msra.mxu0 0.0
    %310 = vmatprep.subr.mxu0 0.0
    %311 = vmatpush1.msra.mxu0 0.0
    %312 = vmatprep.subr.mxu0 0.0
    %313 = vmatpush1.msra.mxu0 0.0
    %314 = vmatprep.subr.mxu0 0.0
    %315 = vmatpush1.msra.mxu0 0.0
    %316 = vmatprep.subr.mxu0 0.0
    %317 = vmatpush1.msra.mxu0 0.0
    %318 = vmatprep.subr.mxu0 0.0
    %319 = vmatpush1.msra.mxu0 0.0
    %320 = vmatprep.subr.mxu0 0.0
    %321 = vmatpush1.msra.mxu0 0.0
    %322 = vmatprep.subr.mxu0 0.0
    %323 = vmatpush1.msra.mxu0 0.0
    %324 = vmatprep.subr.mxu0 0.0
    %325 = vmatpush1.msra.mxu0 0.0
    %326 = vmatprep.subr.mxu0 0.0
    %327 = vmatpush1.msra.mxu0 0.0
    %328 = vmatprep.subr.mxu0 0.0
    %329 = vmatpush1.msra.mxu0 0.0
    %330 = vmatprep.subr.mxu0 0.0
    %331 = vmatpush1.msra.mxu0 0.0
    %332 = vmatprep.subr.mxu0 0.0
    %333 = vmatpush1.msra.mxu0 0.0
    %334 = vmatprep.subr.mxu0 0.0
    %335 = vmatpush1.msra.mxu0 0.0
    %336 = vmatprep.subr.mxu0 0.0
    %337 = vmatpush1.msra.mxu0 0.0
    %338 = vmatprep.subr.mxu0 0.0
    %339 = vmatpush1.msra.mxu0 0.0
    %340 = vmatprep.subr.mxu0 0.0
    %341 = vmatpush1.msra.mxu0 0.0
    %342 = vmatprep.subr.mxu0 0.0
    %343 = vmatpush1.msra.mxu0 0.0
    %344 = vmatprep.subr.mxu0 0.0
    %345 = vmatpush1.msra.mxu0 0.0
    %346 = vmatprep.mubr.f32.mxu0 0.0
    %347 = vmatmul.mubr.f32.gmra.mrb[0].mxu0 %v277
    %v348 = vpop.f32.mrb[0].mxu0
    %v349 = vadd.f32 %v268, %v348
    %v350 = vpop.f32.mrb[0].mxu0
    %v351 = vadd.f32 %v268, %v350
    %352 = vmatprep.mubr.f32.mxu0 0.0
    %353 = vmatmul.mubr.f32.gmra.mrb[0].mxu0 %v280
    %v354 = vpop.f32.mrb[0].mxu0
    %v355 = vadd.f32 %v273, %v354
    %v356 = vpop.f32.mrb[0].mxu0
    %v357 = vadd.f32 %v273, %v356
    %358 = vdwg.mxu0
    %359 = vst [vmem:[#allocation8] sm:$0xff] %v349
    %360 = vst [vmem:[#allocation8 + $0x8] sm:$0xff] %v351
    %361 = vst [vmem:[#allocation8 + $0x10] sm:$0xff] %v355
    %362 = vst [vmem:[#allocation8 + $0x18] sm:$0xff] %v357
    // Predicated region
    $region26: #{tpu_custom_call.1} parent=1 // pred_check
      _
    $region27: #{tpu_custom_call.1} parent=1 // pred_check_branch
      %364 = sbr.rel (0) target = $region29
    $region28: #{tpu_custom_call.1} parent=1 // pred_region
      %s366 = ssub.s32 512, 512
      %367 = vsyncadd [#allocation5], %s366
      %s368 = sshll.u32 [#allocation8], 4
      %s369 = int_to_ptr.vmem [resolvable:$true] %s368
      %374 = dma.vmem_to_hbm [thread:$0]  %s369, 512, %s4, [#allocation5], 256, 256, 16
    $region29: #{tpu_custom_call.1} parent=1 // pred_fallthru
      _
    // Predicated region
    $region30: #{tpu_custom_call.1} parent=1 // pred_check
      _
    $region31: #{tpu_custom_call.1} parent=1 // pred_check_branch
      %376 = sbr.rel (0) target = $region33
    $region32: #{tpu_custom_call.1} parent=1 // pred_region
      %377 = dma.done [#allocation5], 512
    $region33: #{tpu_custom_call.1} parent=1 // pred_fallthru
      _
    %378 = vsyncpa [#allocation4], 1
    %379 = vsyncpa [#allocation7], 1
    %380 = vsyncpa [#allocation5], 1

</llo_original>
